<compile_context>
chip_gen: v6e
topology: v6e:2x2x1
jax: 0.10.0
libtpu: 0.0.40
codegen_flags: <defaults>
</compile_context>

<pallas_src>
import functools
import math

import jax
import jax.numpy as jnp
from jax import lax
from jax.experimental import pallas as pl
from jax.experimental.pallas import tpu as pltpu

_EPS = 1e-12  # F.normalize default eps
_NORM_VMEM_BUDGET = 24 * 1024 * 1024  # headroom under the 32 MiB scoped default


def _round_up(n, m):
    return ((n + m - 1) // m) * m


# --------------------------------------------------------------------------
# Kernel 1: per-head row L2 normalization (times a scalar), bf16 output.
# --------------------------------------------------------------------------
def _headnorm_kernel(x_ref, scale_ref, o_ref, *, num_head):
    """Per-head L2 normalization of each row along the feature axis, times scale.

    Reductions are done in f32; per-head slices are scaled and written directly
    into the (bf16) output ref.  rsqrt(max(||x||^2, eps^2)) == 1/max(||x||, eps)
    and maps to the EUP (no divide).
    """
    feat = x_ref.shape[-1]
    head_dim = feat // num_head
    scale = scale_ref[0].astype(jnp.float32)
    for h in range(num_head):
        # TODO(synk): when head_dim % 128 != 0 these static slices are not
        # lane-aligned; for production shapes keep head_dim a multiple of 128.
        sl = x_ref[:, h * head_dim:(h + 1) * head_dim].astype(jnp.float32)
        sumsq = jnp.sum(sl * sl, axis=-1, keepdims=True)
        inv = lax.rsqrt(jnp.maximum(sumsq, _EPS * _EPS)) * scale
        o_ref[:, h * head_dim:(h + 1) * head_dim] = (sl * inv).astype(o_ref.dtype)


def _pick_norm_row_tile(rows, feat, in_bytes, out_bytes):
    """Largest row tile (multiple of 8) dividing `rows` that fits VMEM budget."""
    for c in (512, 256, 128, 64, 32, 16, 8):
        if rows % c == 0 and 2 * c * feat * (in_bytes + out_bytes) <= _NORM_VMEM_BUDGET:
            return c
    return 8  # rows are always padded to a multiple of 8 by the wrapper


def _normalize_rows(a, scale, num_head, out_dtype=jnp.bfloat16):
    R, F = a.shape
    tr = _pick_norm_row_tile(R, F, a.dtype.itemsize, jnp.dtype(out_dtype).itemsize)
    kernel = functools.partial(_headnorm_kernel, num_head=num_head)
    return pl.pallas_call(
        kernel,
        out_shape=jax.ShapeDtypeStruct((R, F), out_dtype),
        grid=(R // tr,),
        in_specs=[
            pl.BlockSpec((tr, F), lambda i: (i, 0)),
            pl.BlockSpec(memory_space=pltpu.MemorySpace.SMEM),  # scalar scale
        ],
        out_specs=pl.BlockSpec((tr, F), lambda i: (i, 0)),
        compiler_params=pltpu.CompilerParams(
            dimension_semantics=("parallel",)),
    )(a, scale)


# --------------------------------------------------------------------------
# Kernel 2: K-tiled matmul of the normalized operands, f32 accumulation.
# --------------------------------------------------------------------------
def _cos_matmul_kernel(xn_ref, wn_ref, o_ref, acc_ref):
    # (TM, TK) x (TN, TK) contracted on the last dims -> (TM, TN) f32 partials,
    # accumulated across the K grid axis in a VMEM scratch.  No materialized
    # transpose; lane-dense output tile along the O axis.
    @pl.when(pl.program_id(2) == 0)
    def _init():
        acc_ref[...] = jnp.zeros_like(acc_ref)

    acc_ref[...] += lax.dot_general(
        xn_ref[...], wn_ref[...],
        dimension_numbers=(((1,), (1,)), ((), ())),
        preferred_element_type=jnp.float32,
    )

    @pl.when(pl.program_id(2) == pl.num_programs(2) - 1)
    def _finalize():
        o_ref[...] = acc_ref[...].astype(o_ref.dtype)


def _matmul_tiles(B, O, F):
    # Largest lane-dense tiles capped so the bf16 double-buffered footprint
    # (~2*2*(tm+tn)*tk*2B + tm*tn*4B) stays well under the 32 MiB scoped VMEM
    # default on every generation (≈9 MiB at the caps below).
    tm = min(512, _round_up(B, 8))      # sublane axis: multiple of 8
    tn = min(512, _round_up(O, 128))    # lane axis: multiple of 128
    tk = min(1024, _round_up(F, 128))   # reduction tile
    return tm, tn, tk


# --------------------------------------------------------------------------
# Wrapper
# --------------------------------------------------------------------------
def cosine_linear(x, weight, sigma=None, num_head=1):
    """out = sigma * (per-head L2-normalized x) @ (per-head L2-normalized W).T

    x: (B, in_features), weight: (out_features, in_features), sigma: (1,) or None.
    """
    B, F = x.shape
    O, Fw = weight.shape
    assert F == Fw and F % num_head == 0

    if sigma is None:
        sigma_arr = jnp.ones((1,), jnp.float32)
    else:
        sigma_arr = jnp.asarray(sigma, jnp.float32).reshape((1,))
    one = jnp.ones((1,), jnp.float32)

    tm, tn, tk = _matmul_tiles(B, O, F)
    Bp, Op, Fp = _round_up(B, tm), _round_up(O, tn), _round_up(F, tk)

    # Zero-pad rows so all grids divide exactly (zero rows normalize to zero and
    # contribute nothing to the matmul); padding is sliced off at the end.
    xp = jnp.pad(x, ((0, Bp - B), (0, 0))) if Bp != B else x
    wp = jnp.pad(weight, ((0, Op - O), (0, 0))) if Op != O else weight

    # W is a parameter reused across every batch tile: normalize it ONCE, not
    # per output tile.  Fold sigma into the x-side inverse norm so the (B, O)
    # output needs no extra elementwise pass.  Outputs are bf16 (unit-bounded
    # rows) -> half the HBM/VMEM for the matmul inputs, full bf16 MXU rate.
    xn = _normalize_rows(xp, sigma_arr, num_head)   # (Bp, F) bf16
    wn = _normalize_rows(wp, one, num_head)         # (Op, F) bf16

    # Zero-pad the contraction axis AFTER normalization (so per-head boundaries
    # are untouched); padded K columns contribute exactly zero.
    if Fp != F:
        xn = jnp.pad(xn, ((0, 0), (0, Fp - F)))
        wn = jnp.pad(wn, ((0, 0), (0, Fp - F)))

    out = pl.pallas_call(
        _cos_matmul_kernel,
        out_shape=jax.ShapeDtypeStruct((Bp, Op), x.dtype),
        grid=(Bp // tm, Op // tn, Fp // tk),
        in_specs=[
            pl.BlockSpec((tm, tk), lambda i, j, k: (i, k)),   # normalized x tile
            pl.BlockSpec((tn, tk), lambda i, j, k: (j, k)),   # normalized W tile
        ],
        out_specs=pl.BlockSpec((tm, tn), lambda i, j, k: (i, j)),
        scratch_shapes=[pltpu.VMEM((tm, tn), jnp.float32)],
        compiler_params=pltpu.CompilerParams(
            dimension_semantics=("parallel", "parallel", "arbitrary")),
    )(xn, wn)

    if Bp != B or Op != O:
        out = out[:B, :O]
    return out


# --------------------------------------------------------------------------
# Pure-JAX reference and self-test
# --------------------------------------------------------------------------
def _reference(x, weight, sigma, num_head=1):
    head_dim = x.shape[1] // num_head
    out = 0.0
    for h in range(num_head):
        xs = x[:, h * head_dim:(h + 1) * head_dim]
        ws = weight[:, h * head_dim:(h + 1) * head_dim]
        xs = xs / jnp.maximum(jnp.linalg.norm(xs, axis=1, keepdims=True), _EPS)
        ws = ws / jnp.maximum(jnp.linalg.norm(ws, axis=1, keepdims=True), _EPS)
        out = out + xs @ ws.T
    return sigma[0] * out


if __name__ == "__main__":
    batch, in_features, out_features = 8, 32, 16

    key = jax.random.PRNGKey(0)
    kx, kw = jax.random.split(key)

    # Deterministic init matching the module's reset_parameters():
    #   weight ~ U(-stdv, stdv), stdv = 1/sqrt(in_features); sigma = 1.0
    stdv = 1.0 / math.sqrt(in_features)
    weight = jax.random.uniform(
        kw, (out_features, in_features), jnp.float32, minval=-stdv, maxval=stdv)
    sigma = jnp.ones((1,), jnp.float32)

    x = jax.random.normal(kx, (batch, in_features), jnp.float32)

    # num_head = 1 (default path).  bf16 normalized operands -> wider tolerance.
    out1 = jax.block_until_ready(cosine_linear(x, weight, sigma, num_head=1))
    ref1 = _reference(x, weight, sigma, num_head=1)
    assert out1.shape == ref1.shape
    assert jnp.allclose(out1, ref1, atol=2e-2, rtol=2e-2), \
        float(jnp.max(jnp.abs(out1 - ref1)))

    # num_head = 2 (multi-head path: per-head normalization, summed heads)
    out2 = jax.block_until_ready(cosine_linear(x, weight, sigma, num_head=2))
    ref2 = _reference(x, weight, sigma, num_head=2)
    assert out2.shape == ref2.shape
    assert jnp.allclose(out2, ref2, atol=2e-2, rtol=2e-2), \
        float(jnp.max(jnp.abs(out2 - ref2)))

    print("KERNEL_OK")
</pallas_src>

<mosaic_0001>
module attributes {stable_mosaic.version = 11 : i64} {
  func.func @_headnorm_kernel(%arg0: i32, %arg1: memref<8x32xf32, #tpu.memory_space<vmem>>, %arg2: memref<1xf32, #tpu.memory_space<smem>>, %arg3: memref<8x32xbf16, #tpu.memory_space<vmem>>) attributes {dimension_semantics = [#tpu.dimension_semantics<parallel>], iteration_bounds = array<i64: 1>, scalar_prefetch = 0 : i64, scratch_operands = 0 : i64, tpu.core_type = #tpu.core_type<tc>, window_params = [{transform_indices = @transform_0, window_bounds = array<i64: 8, 32>}, {transform_indices = @transform_1, window_bounds = array<i64: 1>}, {transform_indices = @transform_2, window_bounds = array<i64: 8, 32>}]} {
    %c0 = arith.constant 0 : index
    %0 = memref.load %arg2[%c0] : memref<1xf32, #tpu.memory_space<smem>>
    %c0_0 = arith.constant 0 : index
    %c0_1 = arith.constant 0 : index
    %1 = vector.load %arg1[%c0_0, %c0_1] : memref<8x32xf32, #tpu.memory_space<vmem>>, vector<8x32xf32>
    %2 = arith.mulf %1, %1 : vector<8x32xf32>
    %cst = arith.constant dense<0.000000e+00> : vector<8xf32>
    %3 = vector.multi_reduction <add>, %2, %cst [1] : vector<8x32xf32> to vector<8xf32>
    %4 = vector.shape_cast %3 : vector<8xf32> to vector<8x1xf32>
    %cst_2 = arith.constant 1.000000e-24 : f32
    %5 = vector.broadcast %cst_2 : f32 to vector<8x1xf32>
    %6 = arith.maximumf %4, %5 : vector<8x1xf32>
    %7 = math.rsqrt %6 : vector<8x1xf32>
    %8 = vector.broadcast %0 : f32 to vector<8x1xf32>
    %9 = arith.mulf %7, %8 : vector<8x1xf32>
    %10 = vector.broadcast %9 : vector<8x1xf32> to vector<8x32xf32>
    %11 = arith.mulf %1, %10 : vector<8x32xf32>
    %12 = arith.truncf %11 : vector<8x32xf32> to vector<8x32xbf16>
    %c0_3 = arith.constant 0 : index
    %c0_4 = arith.constant 0 : index
    %13 = vector.load %arg3[%c0_3, %c0_4] : memref<8x32xbf16, #tpu.memory_space<vmem>>, vector<8x32xbf16>
    tpu.vector_store %arg3[%c0_3, %c0_4], %12 {strides = array<i32>} : memref<8x32xbf16, #tpu.memory_space<vmem>>, vector<8x32xbf16>,
    return
  }
  func.func @transform_0(%arg0: i32) -> (i32, i32) {
    %c0_i32 = arith.constant 0 : i32
    %c0_i32_0 = arith.constant 0 : i32
    return %arg0, %c0_i32 : i32, i32
  }
  func.func @transform_1(%arg0: i32) -> i32 {
    %c0_i32 = arith.constant 0 : i32
    %c0_i32_0 = arith.constant 0 : i32
    return %c0_i32 : i32
  }
  func.func @transform_2(%arg0: i32) -> (i32, i32) {
    %c0_i32 = arith.constant 0 : i32
    %c0_i32_0 = arith.constant 0 : i32
    return %arg0, %c0_i32 : i32, i32
  }
}

</mosaic_0001>

<llo_original>
// kernel: tpu_custom_call.1
$region0: #{tpu_custom_call.1}
  #allocation0 [shape = 'u32[]', space=smem, size = 0x4, offset = 0x4, fixed_abs, tag = 'smem constant byte address 0x4 - core index']
  #allocation1 [shape = 'u32[144,128]{1,0:T(1,128)}', space=vmem, size = 0x12000, scoped, tag = 'internal scratch']
  #allocation2 [shape = 'f32[1]{0:T(128)S(6)}', space=smem, size = 0x200, scoped, tag = 'scoped memory for tpu_custom_call.1']
  %s0 = inlined_call_operand.hbm [shape: f32[8,32], index: 0, kind: input, shape index: {}]
  %s1 = inlined_call_operand.<no memory space> [shape: f32[1], index: 1, kind: input, shape index: {}]
  %s2 = inlined_call_operand.hbm [shape: bf16[8,32], index: 2, kind: output, shape index: {}]
  %s3 = sld [smem:[#allocation0]]
  $region22: #{tpu_custom_call.1} parent=0
    _
  %s5 = ssub.s32 1, %s3
  %s6 = scalar_select 0, %s5, %s3
  %7 = sst [smem:[#allocation2]] %s1
  $region1: #{tpu_custom_call.1} parent=0
    #allocation3 [shape = 'u8[4096]{0}', space=vmem, size = 0x1000, scoped, tag = 'input window, operand 0, single buffered']
    #allocation4 [shape = 's32[1]{0}', space=sflag, size = 0x4, scoped, tag = 'scoped memory for tpu_custom_call.1']
    #allocation5 [shape = 's32[1]{0}', space=sflag, size = 0x4, scoped, tag = 'scoped memory for tpu_custom_call.1']
    #allocation6 [shape = 'u8[2048]{0}', space=vmem, size = 0x800, scoped, tag = 'output window, operand 0, single buffered']
    %8 = vsyncpa [#allocation4], 0
    %9 = vsyncpa [#allocation5], 0
    // Predicated region
    $region2: #{tpu_custom_call.1} parent=1 // pred_check
      _
    $region3: #{tpu_custom_call.1} parent=1 // pred_check_branch
      %11 = sbr.rel (0) target = $region5
    $region4: #{tpu_custom_call.1} parent=1 // pred_region
      %s13 = ssub.s32 128, 128
      %14 = vsyncadd [#allocation4], %s13
      %s16 = sshll.u32 [#allocation3], 4
      %s17 = int_to_ptr.vmem [resolvable:$true] %s16
      %19 = dma.hbm_to_vmem [thread:$0]  %s0, 128, %s17, [#allocation4]
    $region5: #{tpu_custom_call.1} parent=1 // pred_fallthru
      _
    // Predicated region
    $region6: #{tpu_custom_call.1} parent=1 // pred_check
      _
    $region7: #{tpu_custom_call.1} parent=1 // pred_check_branch
      %21 = sbr.rel (0) target = $region9
    $region8: #{tpu_custom_call.1} parent=1 // pred_region
      _
    $region9: #{tpu_custom_call.1} parent=1 // pred_fallthru
      _
    // Predicated region
    $region10: #{tpu_custom_call.1} parent=1 // pred_check
      _
    $region11: #{tpu_custom_call.1} parent=1 // pred_check_branch
      %23 = sbr.rel (0) target = $region13
    $region12: #{tpu_custom_call.1} parent=1 // pred_region
      %24 = dma.done [#allocation4], 128
    $region13: #{tpu_custom_call.1} parent=1 // pred_fallthru
      _
    %s25 = sld [smem:[#allocation2]]
    %v26 = vld [vmem:[#allocation3] sm:$0xff]
    %v27 = vmul.f32 %v26, %v26
    %vm28 = vcmask 261120
    %v29 = vsel %vm28, %v27, 0.0
    %30 = vadd.xlane.f32.xlu0 %v29
    %v31 = vpop.xlane.xlu0 %30
    %v32 = vmax.f32 %v31, 1e-24
    %v33 = vrsqrt.pop %v32
    %v34 = vstv %s25
    %v35 = vmul.f32 %v33, %v34
    %v36 = vmul.f32 %v26, %v35
    %v37 = vpack.c.bf16 %v36, %v36
    %vm38 = vcmask 257024
    %39 = vst.msk [vmem:[#allocation6] sm:$0xf] %vm38, %v37
    // Predicated region
    $region14: #{tpu_custom_call.1} parent=1 // pred_check
      _
    $region15: #{tpu_custom_call.1} parent=1 // pred_check_branch
      %41 = sbr.rel (0) target = $region17
    $region16: #{tpu_custom_call.1} parent=1 // pred_region
      %s43 = ssub.s32 64, 64
      %44 = vsyncadd [#allocation5], %s43
      %s46 = sshll.u32 [#allocation6], 4
      %s47 = int_to_ptr.vmem [resolvable:$true] %s46
      %49 = dma.vmem_to_hbm [thread:$0]  %s47, 64, %s2, [#allocation5]
    $region17: #{tpu_custom_call.1} parent=1 // pred_fallthru
      _
    // Predicated region
    $region18: #{tpu_custom_call.1} parent=1 // pred_check
      _
    $region19: #{tpu_custom_call.1} parent=1 // pred_check_branch
      %51 = sbr.rel (0) target = $region21
    $region20: #{tpu_custom_call.1} parent=1 // pred_region
      %52 = dma.done [#allocation5], 64
    $region21: #{tpu_custom_call.1} parent=1 // pred_fallthru
      _
    %53 = vsyncpa [#allocation4], 1
    %54 = vsyncpa [#allocation5], 1

</llo_original>
